<compile_context>
chip_gen: v7x
topology: tpu7x:2x2x1
jax: 0.10.0
libtpu: 0.0.40
codegen_flags: <defaults>
</compile_context>

<pallas_src>
import jax
import jax.numpy as jnp
from jax.experimental import pallas as pl
from jax.experimental.pallas import tpu as pltpu


# ----------------------------------------------------------------------------
# Bilinear x2 upsample (align_corners=False, PyTorch semantics)
# ----------------------------------------------------------------------------
def interp_matrix(size):
    """(2*size, size) bilinear interpolation matrix, half-pixel centers,
    matching torch.nn.Upsample(scale_factor=2, mode='bilinear',
    align_corners=False)."""
    out = 2 * size
    o = jnp.arange(out, dtype=jnp.float32)
    src = jnp.clip((o + 0.5) * 0.5 - 0.5, 0.0, float(size - 1))
    i0 = jnp.floor(src).astype(jnp.int32)
    i1 = jnp.minimum(i0 + 1, size - 1)
    w1 = src - i0.astype(jnp.float32)
    w0 = 1.0 - w1
    U = jnp.zeros((out, size), jnp.float32)
    U = U.at[jnp.arange(out), i0].add(w0)
    U = U.at[jnp.arange(out), i1].add(w1)
    return U


def upsample2x_nhwc_pallas(x_nhwc):
    """x_nhwc: (N, H, W, C) -> (N, 2H, 2W, C), bilinear x2, one matmul per n."""
    N, H, W, C = x_nhwc.shape
    # Kronecker of the two 1-D interpolation matrices: (4*H*W, H*W).
    U2 = jnp.kron(interp_matrix(H), interp_matrix(W))

    def kernel(x_ref, u2_ref, o_ref):
        xf = x_ref[0].reshape(H * W, C)
        y = jnp.dot(u2_ref[...], xf, preferred_element_type=jnp.float32)
        o_ref[0] = y.reshape(2 * H, 2 * W, C)

    return pl.pallas_call(
        kernel,
        out_shape=jax.ShapeDtypeStruct((N, 2 * H, 2 * W, C), jnp.float32),
        grid=(N,),
        in_specs=[
            pl.BlockSpec((1, H, W, C), lambda n: (n, 0, 0, 0)),
            pl.BlockSpec((4 * H * W, H * W), lambda n: (0, 0)),
        ],
        out_specs=pl.BlockSpec((1, 2 * H, 2 * W, C), lambda n: (n, 0, 0, 0)),
        compiler_params=pltpu.CompilerParams(
            dimension_semantics=("parallel",)),
    )(x_nhwc, U2)


# ----------------------------------------------------------------------------
# Fused ResBlock (stride=1):  out = conv1x1(cat) + conv3x3(relu(conv3x3(relu(cat))))
# Everything (concat, padding, h1) stays in VMEM inside one kernel.
# ----------------------------------------------------------------------------
def _zero_pad_hw1(v):
    """Zero-pad a (H, W, C) VMEM value by 1 pixel on each spatial side."""
    H, W, C = v.shape
    zc = jnp.zeros((H, 1, C), v.dtype)
    v = jnp.concatenate([zc, v, zc], axis=1)          # (H, W+2, C)
    zr = jnp.zeros((1, W + 2, C), v.dtype)
    return jnp.concatenate([zr, v, zr], axis=0)       # (H+2, W+2, C)


def _im2col_3x3(v_pad, H, W, C):
    """v_pad: (H+2, W+2, C) zero-padded; returns (H*W, 9*C) patch matrix whose
    column order matches w.reshape(9*C, Cout) for w of shape (3, 3, C, Cout)."""
    taps = [v_pad[dh:dh + H, dw:dw + W, :].reshape(H * W, C)
            for dh in range(3) for dw in range(3)]
    return jnp.concatenate(taps, axis=-1)


def resblock_kernel(before_ref, d_ref, wskip_ref, bskip_ref, w1_ref, b1_ref,
                    w2_ref, b2_ref, out_ref):
    _, H, W, Cb = before_ref.shape
    Cd = d_ref.shape[-1]
    Cin = Cb + Cd
    Cout = out_ref.shape[-1]

    # In-VMEM channel concat (replaces the wrapper-side HBM concat).
    x = jnp.concatenate([before_ref[0], d_ref[0]], axis=-1)        # (H, W, Cin)

    # Skip path: 1x1 conv == matmul.
    skip = jnp.dot(x.reshape(H * W, Cin), wskip_ref[...],
                   preferred_element_type=jnp.float32) + bskip_ref[...]

    # Conv path: ReLU -> 3x3 conv (single im2col matmul) -> ReLU -> 3x3 conv.
    xr_pad = _zero_pad_hw1(jnp.maximum(x, 0.0))                    # (H+2, W+2, Cin)
    p1 = _im2col_3x3(xr_pad, H, W, Cin)                            # (H*W, 9*Cin)
    h1 = jnp.maximum(
        jnp.dot(p1, w1_ref[...], preferred_element_type=jnp.float32)
        + b1_ref[...], 0.0)                                        # (H*W, Cout)

    h1_pad = _zero_pad_hw1(h1.reshape(H, W, Cout))                 # (H+2, W+2, Cout)
    p2 = _im2col_3x3(h1_pad, H, W, Cout)                           # (H*W, 9*Cout)
    conv2 = jnp.dot(p2, w2_ref[...],
                    preferred_element_type=jnp.float32) + b2_ref[...]

    out_ref[0] = (skip + conv2).reshape(H, W, Cout)


def resblock_pallas(before_nhwc, d_nhwc, p):
    """before_nhwc: (N, H, W, Cb); d_nhwc: (N, H, W, Cd) -> (N, H, W, Cout)."""
    N, H, W, Cb = before_nhwc.shape
    Cd = d_nhwc.shape[-1]
    Cin = Cb + Cd
    Cout = p["wskip"].shape[1]
    w1cat = p["w1"].reshape(9 * Cin, Cout)
    w2cat = p["w2"].reshape(9 * Cout, Cout)

    return pl.pallas_call(
        resblock_kernel,
        out_shape=jax.ShapeDtypeStruct((N, H, W, Cout), jnp.float32),
        grid=(N,),
        in_specs=[
            pl.BlockSpec((1, H, W, Cb), lambda n: (n, 0, 0, 0)),
            pl.BlockSpec((1, H, W, Cd), lambda n: (n, 0, 0, 0)),
            pl.BlockSpec((Cin, Cout), lambda n: (0, 0)),
            pl.BlockSpec((1, Cout), lambda n: (0, 0)),
            pl.BlockSpec((9 * Cin, Cout), lambda n: (0, 0)),
            pl.BlockSpec((1, Cout), lambda n: (0, 0)),
            pl.BlockSpec((9 * Cout, Cout), lambda n: (0, 0)),
            pl.BlockSpec((1, Cout), lambda n: (0, 0)),
        ],
        out_specs=pl.BlockSpec((1, H, W, Cout), lambda n: (n, 0, 0, 0)),
        compiler_params=pltpu.CompilerParams(
            dimension_semantics=("parallel",)),
    )(before_nhwc, d_nhwc, p["wskip"], p["bskip"].reshape(1, Cout),
      w1cat, p["b1"].reshape(1, Cout), w2cat, p["b2"].reshape(1, Cout))


# ----------------------------------------------------------------------------
# UpBlock forward (mirrors the PyTorch module; NCHW in / NCHW out)
# ----------------------------------------------------------------------------
def upblock_forward(x_nchw, down_residual_results, params):
    x_nhwc = jnp.transpose(x_nchw, (0, 2, 3, 1))        # tiny pre-upsample tensor
    before = upsample2x_nhwc_pallas(x_nhwc)             # (N, 2H, 2W, Cx) NHWC
    downs = list(down_residual_results)
    out = None
    for p in params:
        d = jnp.transpose(downs.pop(), (0, 2, 3, 1))    # NHWC
        out = resblock_pallas(before, d, p)
        before = out
    return jnp.transpose(out, (0, 3, 1, 2))             # back to NCHW


# ----------------------------------------------------------------------------
# Pure-JAX reference (lax.conv) for verification
# ----------------------------------------------------------------------------
def _conv_ref(x, w_hwio, b, padding):
    y = jax.lax.conv_general_dilated(
        x, w_hwio, (1, 1), padding,
        dimension_numbers=("NHWC", "HWIO", "NHWC"))
    return y + b.reshape(1, 1, 1, -1)


def upblock_reference(x_nchw, downs, params):
    N, C, H, W = x_nchw.shape
    Uh, Uw = interp_matrix(H), interp_matrix(W)
    xu = jnp.einsum("ph,nchw,qw->ncpq", Uh, x_nchw, Uw)
    before = jnp.transpose(xu, (0, 2, 3, 1))
    ds = list(downs)
    out = None
    for p in params:
        d = jnp.transpose(ds.pop(), (0, 2, 3, 1))
        cat = jnp.concatenate([before, d], axis=-1)
        cin = cat.shape[-1]
        skip = _conv_ref(cat, p["wskip"].reshape(1, 1, cin, -1), p["bskip"],
                         "VALID")
        h = _conv_ref(jax.nn.relu(cat), p["w1"], p["b1"], "SAME")
        h = _conv_ref(jax.nn.relu(h), p["w2"], p["b2"], "SAME")
        out = skip + h
        before = out
    return jnp.transpose(out, (0, 3, 1, 2))


# ----------------------------------------------------------------------------
# Deterministic parameter init (PyTorch-Conv2d-like uniform fan-in bounds)
# ----------------------------------------------------------------------------
def init_conv(key, kh, kw, cin, cout):
    kw_key, kb_key = jax.random.split(key)
    bound = 1.0 / float((cin * kh * kw) ** 0.5)
    w = jax.random.uniform(kw_key, (kh, kw, cin, cout), jnp.float32,
                           -bound, bound)
    b = jax.random.uniform(kb_key, (cout,), jnp.float32, -bound, bound)
    return w, b


if __name__ == "__main__":
    # Small shapes consistent with the module:
    #   UpBlock(in_channel=8, out_channel=4, n_resblocks=2)
    #   x: (2, 4, 8, 8) NCHW; each down-residual: (2, 4, 16, 16) NCHW
    N, Cx, H, W = 2, 4, 8, 8
    Cd = 4
    in_channel = Cx + Cd          # 8
    out_channel = 4
    n_resblocks = 2

    root = jax.random.PRNGKey(0)
    k_x, k_d0, k_d1, k_params = jax.random.split(root, 4)
    x = jax.random.normal(k_x, (N, Cx, H, W), jnp.float32)
    down_residual_results = [
        jax.random.normal(k_d0, (N, Cd, 2 * H, 2 * W), jnp.float32),
        jax.random.normal(k_d1, (N, Cd, 2 * H, 2 * W), jnp.float32),
    ]

    pkeys = iter(list(jax.random.split(k_params, 3 * n_resblocks)))
    params = []
    ci = in_channel
    for _ in range(n_resblocks):
        wskip, bskip = init_conv(next(pkeys), 1, 1, ci, out_channel)
        w1, b1 = init_conv(next(pkeys), 3, 3, ci, out_channel)
        w2, b2 = init_conv(next(pkeys), 3, 3, out_channel, out_channel)
        params.append(dict(wskip=wskip.reshape(ci, out_channel), bskip=bskip,
                           w1=w1, b1=b1, w2=w2, b2=b2))
        ci = out_channel * 2      # matches the PyTorch __init__ loop

    out = upblock_forward(x, down_residual_results, params)
    out = jax.block_until_ready(out)
    assert out.shape == (N, out_channel, 2 * H, 2 * W), out.shape

    ref = upblock_reference(x, down_residual_results, params)
    err = float(jnp.max(jnp.abs(out - ref)))
    assert jnp.allclose(out, ref, rtol=1e-3, atol=1e-3), f"max abs err {err}"

    print("KERNEL_OK")
</pallas_src>

<mosaic_0001>
module attributes {stable_mosaic.version = 11 : i64} {
  func.func @kernel(%arg0: i32, %arg1: memref<1x8x8x4xf32, #tpu.memory_space<vmem>>, %arg2: memref<256x64xf32, #tpu.memory_space<vmem>>, %arg3: memref<1x16x16x4xf32, #tpu.memory_space<vmem>>) attributes {dimension_semantics = [#tpu.dimension_semantics<parallel>], iteration_bounds = array<i64: 2>, scalar_prefetch = 0 : i64, scratch_operands = 0 : i64, tpu.core_type = #tpu.core_type<tc>, window_params = [{transform_indices = @transform_0, window_bounds = array<i64: 1, 8, 8, 4>}, {pipeline_mode = #tpu.pipeline_mode<synchronous>, transform_indices = @transform_1, window_bounds = array<i64: 256, 64>}, {transform_indices = @transform_2, window_bounds = array<i64: 1, 16, 16, 4>}]} {
    %c0 = arith.constant 0 : index
    %c0_0 = arith.constant 0 : index
    %c0_1 = arith.constant 0 : index
    %c0_2 = arith.constant 0 : index
    %0 = vector.load %arg1[%c0, %c0_0, %c0_1, %c0_2] : memref<1x8x8x4xf32, #tpu.memory_space<vmem>>, vector<1x8x8x4xf32>
    %1 = vector.shape_cast %0 : vector<1x8x8x4xf32> to vector<8x8x4xf32>
    %2 = vector.shape_cast %1 : vector<8x8x4xf32> to vector<64x4xf32>
    %c0_3 = arith.constant 0 : index
    %c0_4 = arith.constant 0 : index
    %3 = vector.load %arg2[%c0_3, %c0_4] : memref<256x64xf32, #tpu.memory_space<vmem>>, vector<256x64xf32>
    %cst = arith.constant dense<0.000000e+00> : vector<256x4xf32>
    %4 = tpu.matmul %3, %2, %cst {dimension_numbers = #tpu.dot_dimension_numbers<[1], [0], [0], [1], [0, 0, 1, 1], [], []>} : vector<256x64xf32>, vector<64x4xf32>, vector<256x4xf32> -> vector<256x4xf32>
    %5 = vector.shape_cast %4 : vector<256x4xf32> to vector<16x16x4xf32>
    %c0_5 = arith.constant 0 : index
    %c0_6 = arith.constant 0 : index
    %c0_7 = arith.constant 0 : index
    %c0_8 = arith.constant 0 : index
    %6 = vector.load %arg3[%c0_5, %c0_6, %c0_7, %c0_8] : memref<1x16x16x4xf32, #tpu.memory_space<vmem>>, vector<1x16x16x4xf32>
    %7 = vector.shape_cast %6 : vector<1x16x16x4xf32> to vector<16x16x4xf32>
    %8 = vector.shape_cast %5 : vector<16x16x4xf32> to vector<1x16x16x4xf32>
    tpu.vector_store %arg3[%c0_5, %c0_6, %c0_7, %c0_8], %8 {strides = array<i32>} : memref<1x16x16x4xf32, #tpu.memory_space<vmem>>, vector<1x16x16x4xf32>,
    return
  }
  func.func @transform_0(%arg0: i32) -> (i32, i32, i32, i32) {
    %c0_i32 = arith.constant 0 : i32
    %c0_i32_0 = arith.constant 0 : i32
    %c0_i32_1 = arith.constant 0 : i32
    %c0_i32_2 = arith.constant 0 : i32
    return %arg0, %c0_i32, %c0_i32_0, %c0_i32_1 : i32, i32, i32, i32
  }
  func.func @transform_1(%arg0: i32) -> (i32, i32) {
    %c0_i32 = arith.constant 0 : i32
    %c0_i32_0 = arith.constant 0 : i32
    %c0_i32_1 = arith.constant 0 : i32
    return %c0_i32, %c0_i32_0 : i32, i32
  }
  func.func @transform_2(%arg0: i32) -> (i32, i32, i32, i32) {
    %c0_i32 = arith.constant 0 : i32
    %c0_i32_0 = arith.constant 0 : i32
    %c0_i32_1 = arith.constant 0 : i32
    %c0_i32_2 = arith.constant 0 : i32
    return %arg0, %c0_i32, %c0_i32_0, %c0_i32_1 : i32, i32, i32, i32
  }
}

</mosaic_0001>

<llo_original>
// kernel: tpu_custom_call.1
$region0: #{tpu_custom_call.1}
  #allocation0 [shape = 'u32[]', space=smem, size = 0x4, offset = 0x4, fixed_abs, tag = 'smem constant byte address 0x4 - core index']
  #allocation1 [shape = 'u32[144,128]{1,0:T(1,128)}', space=vmem, size = 0x12000, scoped, tag = 'internal scratch']
  %s0 = inlined_call_operand.vmem [shape: f32[2,8,8,4], index: 0, kind: input, shape index: {}]
  %s1 = inlined_call_operand.vmem [shape: f32[256,64], index: 1, kind: input, shape index: {}]
  %s2 = inlined_call_operand.vmem [shape: f32[2,16,16,4], index: 2, kind: output, shape index: {}]
  %s3 = sld [smem:[#allocation0]]
  $region41: #{tpu_custom_call.1} parent=0
    _
  %s5 = ssub.s32 1, %s3
  %s6 = scalar_select 0, %s5, %s3
  loop: start=0, step=1, limit=4
  $region2: #{tpu_custom_call.1} parent=0 // loop_pre_header
    _
  $region3: #{tpu_custom_call.1} parent=0 // loop_header
    %s8 = sphi 0, %s12
    %p9 = scmp.ge.s32.totalorder %s8, 4
    %s18 = sphi 0, %s20
    %s21 = sphi 0, %s18
    %s22 = sphi 0, %s21
    %s38 = sphi 0, %s22
    %s42 = sphi 0, %s42
    %s44 = sphi 0, %s42
    %s45 = sphi 0, %s44
    %s59 = sphi 0, %s45
    %s65 = sphi 0, %s67
    %s68 = sphi 0, %s65
    %s69 = sphi 0, %s68
    %s85 = sphi 0, %s69
  $region4: #{tpu_custom_call.1} parent=0 // loop_header_branch
    %11 = sbr.rel (%p9) target = $region8
  $region5: #{tpu_custom_call.1} parent=0 // loop_body
    %s13 = ssub.s32 %s8, 1
    %s14 = ssub.s32 %s8, 2
    %s15 = sadd.s32 %s8, 1
    %s16 = ssub.s32 %s8, %s15
    %p17 = scmp.eq.s32.totalorder %s16, 0
    %s19 = sadd.s32 %s18, 1
    %s20 = scalar_select %p17, %s18, %s19
    %p23 = pneg %p17
    %p24 = scmp.eq.s32.totalorder %s8, 1
    %p25 = por %p23, %p24
    %p26 = scmp.ne.s32.totalorder %s18, %s21
    %p27 = scmp.eq.s32.totalorder %s8, 0
    %p28 = por %p26, %p27
    %p29 = scmp.ne.s32.totalorder %s18, %s21
    %p30 = scmp.eq.s32.totalorder %s13, 1
    %p31 = por %p29, %p30
    %p32 = scmp.ne.s32.totalorder %s21, %s22
    %p33 = scmp.eq.s32.totalorder %s13, 0
    %p34 = por %p32, %p33
    %p35 = scmp.ne.s32.totalorder %s21, %s22
    %p36 = scmp.eq.s32.totalorder %s14, 1
    %p37 = por %p35, %p36
    %p39 = scmp.ne.s32.totalorder %s22, %s38
    %p40 = scmp.eq.s32.totalorder %s14, 0
    %p41 = por %p39, %p40
    %s43 = sadd.s32 %s42, 1
    %p46 = scmp.eq.s32.totalorder %s8, 1
    %p47 = scmp.ne.s32.totalorder %s42, %s44
    %p48 = scmp.eq.s32.totalorder %s8, 0
    %p49 = por %p47, %p48
    %p50 = scmp.ne.s32.totalorder %s42, %s44
    %p51 = scmp.eq.s32.totalorder %s13, 1
    %p52 = por %p50, %p51
    %p53 = scmp.ne.s32.totalorder %s44, %s45
    %p54 = scmp.eq.s32.totalorder %s13, 0
    %p55 = por %p53, %p54
    %p56 = scmp.ne.s32.totalorder %s44, %s45
    %p57 = scmp.eq.s32.totalorder %s14, 1
    %p58 = por %p56, %p57
    %p60 = scmp.ne.s32.totalorder %s45, %s59
    %p61 = scmp.eq.s32.totalorder %s14, 0
    %p62 = por %p60, %p61
    %s63 = ssub.s32 %s8, %s15
    %p64 = scmp.eq.s32.totalorder %s63, 0
    %s66 = sadd.s32 %s65, 1
    %s67 = scalar_select %p64, %s65, %s66
    %p70 = pneg %p64
    %p71 = scmp.eq.s32.totalorder %s8, 1
    %p72 = por %p70, %p71
    %p73 = scmp.ne.s32.totalorder %s65, %s68
    %p74 = scmp.eq.s32.totalorder %s8, 0
    %p75 = por %p73, %p74
    %p76 = scmp.ne.s32.totalorder %s65, %s68
    %p77 = scmp.eq.s32.totalorder %s13, 1
    %p78 = por %p76, %p77
    %p79 = scmp.ne.s32.totalorder %s68, %s69
    %p80 = scmp.eq.s32.totalorder %s13, 0
    %p81 = por %p79, %p80
    %p82 = scmp.ne.s32.totalorder %s68, %s69
    %p83 = scmp.eq.s32.totalorder %s14, 1
    %p84 = por %p82, %p83
    %p86 = scmp.ne.s32.totalorder %s69, %s85
    %p87 = scmp.eq.s32.totalorder %s14, 0
    %p88 = por %p86, %p87
    %p89 = scmp.le.s32.totalorder 1, %s8
    %p90 = scmp.lt.s32.totalorder %s8, 3
    %p91 = pnand %p89, %p90
    %p92 = pneg %p91
    // Predicated region
    $region9: #{tpu_custom_call.1} parent=5 // pred_check
      _
    $region10: #{tpu_custom_call.1} parent=5 // pred_check_branch
      %94 = sbr.rel (%p91) target = $region12
    $region11: #{tpu_custom_call.1} parent=5 // pred_region
      %s95 = ssub.s32 %s8, 1
      // Predicated region
      $region13: #{tpu_custom_call.1} parent=11 // pred_check
        %p96 = pneg %p55
      $region14: #{tpu_custom_call.1} parent=11 // pred_check_branch
        %98 = sbr.rel (%p96) target = $region16
      $region15: #{tpu_custom_call.1} parent=11 // pred_region
        _
      $region16: #{tpu_custom_call.1} parent=11 // pred_fallthru
        _
    $region12: #{tpu_custom_call.1} parent=5 // pred_fallthru
      _
    %p99 = scmp.lt.s32.totalorder %s8, 2
    // Predicated region
    $region17: #{tpu_custom_call.1} parent=5 // pred_check
      %p100 = pneg %p99
    $region18: #{tpu_custom_call.1} parent=5 // pred_check_branch
      %102 = sbr.rel (%p100) target = $region20
    $region19: #{tpu_custom_call.1} parent=5 // pred_region
      // Predicated region
      $region21: #{tpu_custom_call.1} parent=19 // pred_check
        %p103 = pneg %p28
      $region22: #{tpu_custom_call.1} parent=19 // pred_check_branch
        %105 = sbr.rel (%p103) target = $region24
      $region23: #{tpu_custom_call.1} parent=19 // pred_region
        %p106 = scmp.lt.s32.totalorder %s8, 1
        %s107 = scalar_select %p106, %s8, 1
        %s108 = smul.addr %s107, 8
        %s109 = smul.addr %s108, 8
        %s110 = scalar_lea.vmem %s0, %s109
      $region24: #{tpu_custom_call.1} parent=19 // pred_fallthru
        _
    $region20: #{tpu_custom_call.1} parent=5 // pred_fallthru
      _
    %p111 = scmp.le.s32.totalorder 1, %s8
    %p112 = scmp.lt.s32.totalorder %s8, 3
    %p113 = pnand %p111, %p112
    %p114 = pneg %p113
    // Predicated region
    $region25: #{tpu_custom_call.1} parent=5 // pred_check
      _
    $region26: #{tpu_custom_call.1} parent=5 // pred_check_branch
      %116 = sbr.rel (%p113) target = $region28
    $region27: #{tpu_custom_call.1} parent=5 // pred_region
      %s117 = ssub.s32 %s8, 1
      %p118 = scmp.lt.s32.totalorder %s13, 1
      %s119 = scalar_select %p118, %s13, 1
      %s120 = smul.addr %s119, 8
      %s121 = smul.addr %s120, 8
      %s122 = scalar_lea.vmem %s0, %s121
      %p123 = pneg %p34
      %p124 = pneg %p31
      %p125 = pneg %p55
      %p126 = pneg %p52
      %p127 = pneg %p81
      %p128 = pneg %p78
      %p129 = scmp.lt.s32.totalorder %s13, 1
      %s130 = scalar_select %p129, %s13, 1
      %s131 = smul.addr %s130, 32
      %s132 = smul.addr %s131, 8
      %s133 = scalar_lea.vmem %s2, %s132
      %p134 = scmp.lt.s32.totalorder %s13, 1
      %s135 = scalar_select %p134, %s13, 1
      %s136 = smul.addr %s135, 8
      %s137 = smul.addr %s136, 8
      %s138 = scalar_lea.vmem %s0, %s137
      %p139 = scmp.lt.s32.totalorder %s13, 1
      %s140 = scalar_select %p139, %s13, 1
      %s141 = smul.addr %s140, 32
      %s142 = smul.addr %s141, 8
      %s143 = scalar_lea.vmem %s2, %s142
      %v144 = vld [vmem:[%s138] sm:$0xff]
      %v145 = vld [vmem:[%s138 + $0x8] sm:$0xff]
      %v146 = vld [vmem:[%s138 + $0x10] sm:$0xff]
      %v147 = vld [vmem:[%s138 + $0x18] sm:$0xff]
      %v148 = vld [vmem:[%s138 + $0x20] sm:$0xff]
      %v149 = vld [vmem:[%s138 + $0x28] sm:$0xff]
      %v150 = vld [vmem:[%s138 + $0x30] sm:$0xff]
      %v151 = vld [vmem:[%s138 + $0x38] sm:$0xff]
      %v152 = vld [vmem:[%s1] sm:$0xff]
      %v153 = vld [vmem:[%s1 + $0x8] sm:$0xff]
      %v154 = vld [vmem:[%s1 + $0x10] sm:$0xff]
      %v155 = vld [vmem:[%s1 + $0x18] sm:$0xff]
      %v156 = vld [vmem:[%s1 + $0x20] sm:$0xff]
      %v157 = vld [vmem:[%s1 + $0x28] sm:$0xff]
      %v158 = vld [vmem:[%s1 + $0x30] sm:$0xff]
      %v159 = vld [vmem:[%s1 + $0x38] sm:$0xff]
      %v160 = vld [vmem:[%s1 + $0x40] sm:$0xff]
      %v161 = vld [vmem:[%s1 + $0x48] sm:$0xff]
      %v162 = vld [vmem:[%s1 + $0x50] sm:$0xff]
      %v163 = vld [vmem:[%s1 + $0x58] sm:$0xff]
      %v164 = vld [vmem:[%s1 + $0x60] sm:$0xff]
      %v165 = vld [vmem:[%s1 + $0x68] sm:$0xff]
      %v166 = vld [vmem:[%s1 + $0x70] sm:$0xff]
      %v167 = vld [vmem:[%s1 + $0x78] sm:$0xff]
      %v168 = vld [vmem:[%s1 + $0x80] sm:$0xff]
      %v169 = vld [vmem:[%s1 + $0x88] sm:$0xff]
      %v170 = vld [vmem:[%s1 + $0x90] sm:$0xff]
      %v171 = vld [vmem:[%s1 + $0x98] sm:$0xff]
      %v172 = vld [vmem:[%s1 + $0xa0] sm:$0xff]
      %v173 = vld [vmem:[%s1 + $0xa8] sm:$0xff]
      %v174 = vld [vmem:[%s1 + $0xb0] sm:$0xff]
      %v175 = vld [vmem:[%s1 + $0xb8] sm:$0xff]
      %v176 = vld [vmem:[%s1 + $0xc0] sm:$0xff]
      %v177 = vld [vmem:[%s1 + $0xc8] sm:$0xff]
      %v178 = vld [vmem:[%s1 + $0xd0] sm:$0xff]
      %v179 = vld [vmem:[%s1 + $0xd8] sm:$0xff]
      %v180 = vld [vmem:[%s1 + $0xe0] sm:$0xff]
      %v181 = vld [vmem:[%s1 + $0xe8] sm:$0xff]
      %v182 = vld [vmem:[%s1 + $0xf0] sm:$0xff]
      %v183 = vld [vmem:[%s1 + $0xf8] sm:$0xff]
      %vm184 = vcmask 523264
      %v186 = vsel %vm184, %v152, 0
      %v189 = vsel %vm184, %v153, 0
      %v192 = vsel %vm184, %v154, 0
      %v195 = vsel %vm184, %v155, 0
      %v198 = vsel %vm184, %v156, 0
      %v201 = vsel %vm184, %v157, 0
      %v204 = vsel %vm184, %v158, 0
      %v207 = vsel %vm184, %v159, 0
      %v210 = vsel %vm184, %v160, 0
      %v213 = vsel %vm184, %v161, 0
      %v216 = vsel %vm184, %v162, 0
      %v219 = vsel %vm184, %v163, 0
      %v222 = vsel %vm184, %v164, 0
      %v225 = vsel %vm184, %v165, 0
      %v228 = vsel %vm184, %v166, 0
      %v231 = vsel %vm184, %v167, 0
      %v234 = vsel %vm184, %v168, 0
      %v237 = vsel %vm184, %v169, 0
      %v240 = vsel %vm184, %v170, 0
      %v243 = vsel %vm184, %v171, 0
      %v246 = vsel %vm184, %v172, 0
      %v249 = vsel %vm184, %v173, 0
      %v252 = vsel %vm184, %v174, 0
      %v255 = vsel %vm184, %v175, 0
      %v258 = vsel %vm184, %v176, 0
      %v261 = vsel %vm184, %v177, 0
      %v264 = vsel %vm184, %v178, 0
      %v267 = vsel %vm184, %v179, 0
      %v270 = vsel %vm184, %v180, 0
      %v273 = vsel %vm184, %v181, 0
      %v276 = vsel %vm184, %v182, 0
      %v279 = vsel %vm184, %v183, 0
      %281 = vmatprep.subr.mxu0 0.0
      %282 = vmatpush1.msra.mxu0 %v144
      %283 = vmatprep.subr.mxu0 0.0
      %284 = vmatpush1.msra.mxu0 %v145
      %285 = vmatprep.subr.mxu0 0.0
      %286 = vmatpush1.msra.mxu0 %v146
      %287 = vmatprep.subr.mxu0 0.0
      %288 = vmatpush1.msra.mxu0 %v147
      %289 = vmatprep.subr.mxu0 0.0
      %290 = vmatpush1.msra.mxu0 %v148
      %291 = vmatprep.subr.mxu0 0.0
      %292 = vmatpush1.msra.mxu0 %v149
      %293 = vmatprep.subr.mxu0 0.0
      %294 = vmatpush1.msra.mxu0 %v150
      %295 = vmatprep.subr.mxu0 0.0
      %296 = vmatpush1.msra.mxu0 %v151
      %297 = vmatprep.subr.mxu0 0.0
      %298 = vmatpush1.msra.mxu0 0.0
      %299 = vmatprep.subr.mxu0 0.0
      %300 = vmatpush1.msra.mxu0 0.0
      %301 = vmatprep.subr.mxu0 0.0
      %302 = vmatpush1.msra.mxu0 0.0
      %303 = vmatprep.subr.mxu0 0.0
      %304 = vmatpush1.msra.mxu0 0.0
      %305 = vmatprep.subr.mxu0 0.0
      %306 = vmatpush1.msra.mxu0 0.0
      %307 = vmatprep.subr.mxu0 0.0
      %308 = vmatpush1.msra.mxu0 0.0
      %309 = vmatprep.subr.mxu0 0.0
      %310 = vmatpush1.msra.mxu0 0.0
      %311 = vmatprep.subr.mxu0 0.0
      %312 = vmatpush1.msra.mxu0 0.0
      %313 = vmatprep.subr.mxu0 0.0
      %314 = vmatpush1.msra.mxu0 0.0
      %315 = vmatprep.subr.mxu0 0.0
      %316 = vmatpush1.msra.mxu0 0.0
      %317 = vmatprep.subr.mxu0 0.0
      %318 = vmatpush1.msra.mxu0 0.0
      %319 = vmatprep.subr.mxu0 0.0
      %320 = vmatpush1.msra.mxu0 0.0
      %321 = vmatprep.subr.mxu0 0.0
      %322 = vmatpush1.msra.mxu0 0.0
      %323 = vmatprep.subr.mxu0 0.0
      %324 = vmatpush1.msra.mxu0 0.0
      %325 = vmatprep.subr.mxu0 0.0
      %326 = vmatpush1.msra.mxu0 0.0
      %327 = vmatprep.subr.mxu0 0.0
      %328 = vmatpush1.msra.mxu0 0.0
      %329 = vmatprep.subr.mxu0 0.0
      %330 = vmatpush1.msra.mxu0 0.0
      %331 = vmatprep.subr.mxu0 0.0
      %332 = vmatpush1.msra.mxu0 0.0
      %333 = vmatprep.subr.mxu0 0.0
      %334 = vmatpush1.msra.mxu0 0.0
      %335 = vmatprep.subr.mxu0 0.0
      %336 = vmatpush1.msra.mxu0 0.0
      %337 = vmatprep.subr.mxu0 0.0
      %338 = vmatpush1.msra.mxu0 0.0
      %339 = vmatprep.subr.mxu0 0.0
      %340 = vmatpush1.msra.mxu0 0.0
      %341 = vmatprep.subr.mxu0 0.0
      %342 = vmatpush1.msra.mxu0 0.0
      %343 = vmatprep.subr.mxu0 0.0
      %344 = vmatpush1.msra.mxu0 0.0
      %345 = vmatprep.mubr.f32.mxu0 0.0
      %346 = vmatmul.mubr.f32.gmra.mrb[0].mxu0 %v186
      %v347 = vpop.f32.mrb[0].mxu0
      %v348 = vadd.f32 0.0, %v347
      %v349 = vpop.f32.mrb[0].mxu0
      %350 = vmatprep.mubr.f32.mxu0 0.0
      %351 = vmatmul.mubr.f32.gmra.mrb[0].mxu0 %v189
      %v352 = vpop.f32.mrb[0].mxu0
      %v353 = vadd.f32 0.0, %v352
      %v354 = vpop.f32.mrb[0].mxu0
      %355 = vmatprep.mubr.f32.mxu0 0.0
      %356 = vmatmul.mubr.f32.gmra.mrb[0].mxu0 %v192
      %v357 = vpop.f32.mrb[0].mxu0
      %v358 = vadd.f32 0.0, %v357
      %v359 = vpop.f32.mrb[0].mxu0
      %360 = vmatprep.mubr.f32.mxu0 0.0
      %361 = vmatmul.mubr.f32.gmra.mrb[0].mxu0 %v195
      %v362 = vpop.f32.mrb[0].mxu0
      %v363 = vadd.f32 0.0, %v362
      %v364 = vpop.f32.mrb[0].mxu0
      %365 = vmatprep.mubr.f32.mxu0 0.0
      %366 = vmatmul.mubr.f32.gmra.mrb[0].mxu0 %v198
      %v367 = vpop.f32.mrb[0].mxu0
      %v368 = vadd.f32 0.0, %v367
      %v369 = vpop.f32.mrb[0].mxu0
      %370 = vmatprep.mubr.f32.mxu0 0.0
      %371 = vmatmul.mubr.f32.gmra.mrb[0].mxu0 %v201
      %v372 = vpop.f32.mrb[0].mxu0
      %v373 = vadd.f32 0.0, %v372
      %v374 = vpop.f32.mrb[0].mxu0
      %375 = vmatprep.mubr.f32.mxu0 0.0
      %376 = vmatmul.mubr.f32.gmra.mrb[0].mxu0 %v204
      %v377 = vpop.f32.mrb[0].mxu0
      %v378 = vadd.f32 0.0, %v377
      %v379 = vpop.f32.mrb[0].mxu0
      %380 = vmatprep.mubr.f32.mxu0 0.0
      %381 = vmatmul.mubr.f32.gmra.mrb[0].mxu0 %v207
      %v382 = vpop.f32.mrb[0].mxu0
      %v383 = vadd.f32 0.0, %v382
      %v384 = vpop.f32.mrb[0].mxu0
      %385 = vmatprep.mubr.f32.mxu0 0.0
      %386 = vmatmul.mubr.f32.gmra.mrb[0].mxu0 %v210
      %v387 = vpop.f32.mrb[0].mxu0
      %v388 = vadd.f32 0.0, %v387
      %v389 = vpop.f32.mrb[0].mxu0
      %390 = vmatprep.mubr.f32.mxu0 0.0
      %391 = vmatmul.mubr.f32.gmra.mrb[0].mxu0 %v213
      %v392 = vpop.f32.mrb[0].mxu0
      %v393 = vadd.f32 0.0, %v392
      %v394 = vpop.f32.mrb[0].mxu0
      %395 = vmatprep.mubr.f32.mxu0 0.0
      %396 = vmatmul.mubr.f32.gmra.mrb[0].mxu0 %v216
      %v397 = vpop.f32.mrb[0].mxu0
      %v398 = vadd.f32 0.0, %v397
      %v399 = vpop.f32.mrb[0].mxu0
      %400 = vmatprep.mubr.f32.mxu0 0.0
      %401 = vmatmul.mubr.f32.gmra.mrb[0].mxu0 %v219
      %v402 = vpop.f32.mrb[0].mxu0
      %v403 = vadd.f32 0.0, %v402
      %v404 = vpop.f32.mrb[0].mxu0
      %405 = vmatprep.mubr.f32.mxu0 0.0
      %406 = vmatmul.mubr.f32.gmra.mrb[0].mxu0 %v222
      %v407 = vpop.f32.mrb[0].mxu0
      %v408 = vadd.f32 0.0, %v407
      %v409 = vpop.f32.mrb[0].mxu0
      %410 = vmatprep.mubr.f32.mxu0 0.0
      %411 = vmatmul.mubr.f32.gmra.mrb[0].mxu0 %v225
      %v412 = vpop.f32.mrb[0].mxu0
      %v413 = vadd.f32 0.0, %v412
      %v414 = vpop.f32.mrb[0].mxu0
      %415 = vmatprep.mubr.f32.mxu0 0.0
      %416 = vmatmul.mubr.f32.gmra.mrb[0].mxu0 %v228
      %v417 = vpop.f32.mrb[0].mxu0
      %v418 = vadd.f32 0.0, %v417
      %v419 = vpop.f32.mrb[0].mxu0
      %420 = vmatprep.mubr.f32.mxu0 0.0
      %421 = vmatmul.mubr.f32.gmra.mrb[0].mxu0 %v231
      %v422 = vpop.f32.mrb[0].mxu0
      %v423 = vadd.f32 0.0, %v422
      %v424 = vpop.f32.mrb[0].mxu0
      %425 = vmatprep.mubr.f32.mxu0 0.0
      %426 = vmatmul.mubr.f32.gmra.mrb[0].mxu0 %v234
      %v427 = vpop.f32.mrb[0].mxu0
      %v428 = vadd.f32 0.0, %v427
      %v429 = vpop.f32.mrb[0].mxu0
      %430 = vmatprep.mubr.f32.mxu0 0.0
      %431 = vmatmul.mubr.f32.gmra.mrb[0].mxu0 %v237
      %v432 = vpop.f32.mrb[0].mxu0
      %v433 = vadd.f32 0.0, %v432
      %v434 = vpop.f32.mrb[0].mxu0
      %435 = vmatprep.mubr.f32.mxu0 0.0
      %436 = vmatmul.mubr.f32.gmra.mrb[0].mxu0 %v240
      %v437 = vpop.f32.mrb[0].mxu0
      %v438 = vadd.f32 0.0, %v437
      %v439 = vpop.f32.mrb[0].mxu0
      %440 = vmatprep.mubr.f32.mxu0 0.0
      %441 = vmatmul.mubr.f32.gmra.mrb[0].mxu0 %v243
      %v442 = vpop.f32.mrb[0].mxu0
      %v443 = vadd.f32 0.0, %v442
      %v444 = vpop.f32.mrb[0].mxu0
      %445 = vmatprep.mubr.f32.mxu0 0.0
      %446 = vmatmul.mubr.f32.gmra.mrb[0].mxu0 %v246
      %v447 = vpop.f32.mrb[0].mxu0
      %v448 = vadd.f32 0.0, %v447
      %v449 = vpop.f32.mrb[0].mxu0
      %450 = vmatprep.mubr.f32.mxu0 0.0
      %451 = vmatmul.mubr.f32.gmra.mrb[0].mxu0 %v249
      %v452 = vpop.f32.mrb[0].mxu0
      %v453 = vadd.f32 0.0, %v452
      %v454 = vpop.f32.mrb[0].mxu0
      %455 = vmatprep.mubr.f32.mxu0 0.0
      %456 = vmatmul.mubr.f32.gmra.mrb[0].mxu0 %v252
      %v457 = vpop.f32.mrb[0].mxu0
      %v458 = vadd.f32 0.0, %v457
      %v459 = vpop.f32.mrb[0].mxu0
      %460 = vmatprep.mubr.f32.mxu0 0.0
      %461 = vmatmul.mubr.f32.gmra.mrb[0].mxu0 %v255
      %v462 = vpop.f32.mrb[0].mxu0
      %v463 = vadd.f32 0.0, %v462
      %v464 = vpop.f32.mrb[0].mxu0
      %465 = vmatprep.mubr.f32.mxu0 0.0
      %466 = vmatmul.mubr.f32.gmra.mrb[0].mxu0 %v258
      %v467 = vpop.f32.mrb[0].mxu0
      %v468 = vadd.f32 0.0, %v467
      %v469 = vpop.f32.mrb[0].mxu0
      %470 = vmatprep.mubr.f32.mxu0 0.0
      %471 = vmatmul.mubr.f32.gmra.mrb[0].mxu0 %v261
      %v472 = vpop.f32.mrb[0].mxu0
      %v473 = vadd.f32 0.0, %v472
      %v474 = vpop.f32.mrb[0].mxu0
      %475 = vmatprep.mubr.f32.mxu0 0.0
      %476 = vmatmul.mubr.f32.gmra.mrb[0].mxu0 %v264
      %v477 = vpop.f32.mrb[0].mxu0
      %v478 = vadd.f32 0.0, %v477
      %v479 = vpop.f32.mrb[0].mxu0
      %480 = vmatprep.mubr.f32.mxu0 0.0
      %481 = vmatmul.mubr.f32.gmra.mrb[0].mxu0 %v267
      %v482 = vpop.f32.mrb[0].mxu0
      %v483 = vadd.f32 0.0, %v482
      %v484 = vpop.f32.mrb[0].mxu0
      %485 = vmatprep.mubr.f32.mxu0 0.0
      %486 = vmatmul.mubr.f32.gmra.mrb[0].mxu0 %v270
      %v487 = vpop.f32.mrb[0].mxu0
      %v488 = vadd.f32 0.0, %v487
      %v489 = vpop.f32.mrb[0].mxu0
      %490 = vmatprep.mubr.f32.mxu0 0.0
      %491 = vmatmul.mubr.f32.gmra.mrb[0].mxu0 %v273
      %v492 = vpop.f32.mrb[0].mxu0
      %v493 = vadd.f32 0.0, %v492
      %v494 = vpop.f32.mrb[0].mxu0
      %495 = vmatprep.mubr.f32.mxu0 0.0
      %496 = vmatmul.mubr.f32.gmra.mrb[0].mxu0 %v276
      %v497 = vpop.f32.mrb[0].mxu0
      %v498 = vadd.f32 0.0, %v497
      %v499 = vpop.f32.mrb[0].mxu0
      %500 = vmatprep.mubr.f32.mxu0 0.0
      %501 = vmatmul.mubr.f32.gmra.mrb[0].mxu0 %v279
      %v502 = vpop.f32.mrb[0].mxu0
      %v503 = vadd.f32 0.0, %v502
      %v504 = vpop.f32.mrb[0].mxu0
      %505 = vdwg.mxu0
      %vm506 = vcmask 31744
      %507 = vst.msk [vmem:[%s143] sm:$0xff] %vm506, %v348
      %508 = vst.msk [vmem:[%s143 + $0x8] sm:$0xff] %vm506, %v353
      %509 = vst.msk [vmem:[%s143 + $0x10] sm:$0xff] %vm506, %v358
      %510 = vst.msk [vmem:[%s143 + $0x18] sm:$0xff] %vm506, %v363
      %511 = vst.msk [vmem:[%s143 + $0x20] sm:$0xff] %vm506, %v368
      %512 = vst.msk [vmem:[%s143 + $0x28] sm:$0xff] %vm506, %v373
      %513 = vst.msk [vmem:[%s143 + $0x30] sm:$0xff] %vm506, %v378
      %514 = vst.msk [vmem:[%s143 + $0x38] sm:$0xff] %vm506, %v383
      %515 = vst.msk [vmem:[%s143 + $0x40] sm:$0xff] %vm506, %v388
      %516 = vst.msk [vmem:[%s143 + $0x48] sm:$0xff] %vm506, %v393
      %517 = vst.msk [vmem:[%s143 + $0x50] sm:$0xff] %vm506, %v398
      %518 = vst.msk [vmem:[%s143 + $0x58] sm:$0xff] %vm506, %v403
      %519 = vst.msk [vmem:[%s143 + $0x60] sm:$0xff] %vm506, %v408
      %520 = vst.msk [vmem:[%s143 + $0x68] sm:$0xff] %vm506, %v413
      %521 = vst.msk [vmem:[%s143 + $0x70] sm:$0xff] %vm506, %v418
      %522 = vst.msk [vmem:[%s143 + $0x78] sm:$0xff] %vm506, %v423
      %523 = vst.msk [vmem:[%s143 + $0x80] sm:$0xff] %vm506, %v428
      %524 = vst.msk [vmem:[%s143 + $0x88] sm:$0xff] %vm506, %v433
      %525 = vst.msk [vmem:[%s143 + $0x90] sm:$0xff] %vm506, %v438
      %526 = vst.msk [vmem:[%s143 + $0x98] sm:$0xff] %vm506, %v443
      %527 = vst.msk [vmem:[%s143 + $0xa0] sm:$0xff] %vm506, %v448
      %528 = vst.msk [vmem:[%s143 + $0xa8] sm:$0xff] %vm506, %v453
      %529 = vst.msk [vmem:[%s143 + $0xb0] sm:$0xff] %vm506, %v458
      %530 = vst.msk [vmem:[%s143 + $0xb8] sm:$0xff] %vm506, %v463
      %531 = vst.msk [vmem:[%s143 + $0xc0] sm:$0xff] %vm506, %v468
      %532 = vst.msk [vmem:[%s143 + $0xc8] sm:$0xff] %vm506, %v473
      %533 = vst.msk [vmem:[%s143 + $0xd0] sm:$0xff] %vm506, %v478
      %534 = vst.msk [vmem:[%s143 + $0xd8] sm:$0xff] %vm506, %v483
      %535 = vst.msk [vmem:[%s143 + $0xe0] sm:$0xff] %vm506, %v488
      %536 = vst.msk [vmem:[%s143 + $0xe8] sm:$0xff] %vm506, %v493
      %537 = vst.msk [vmem:[%s143 + $0xf0] sm:$0xff] %vm506, %v498
      %538 = vst.msk [vmem:[%s143 + $0xf8] sm:$0xff] %vm506, %v503
      %p539 = scmp.lt.s32.totalorder %s13, 1
      %s540 = scalar_select %p539, %s13, 1
      %s541 = smul.addr %s540, 32
      %s542 = smul.addr %s541, 8
      %s543 = scalar_lea.vmem %s2, %s542
      // Predicated region
      $region29: #{tpu_custom_call.1} parent=27 // pred_check
        %p544 = pneg %p78
      $region30: #{tpu_custom_call.1} parent=27 // pred_check_branch
        %546 = sbr.rel (%p544) target = $region32
      $region31: #{tpu_custom_call.1} parent=27 // pred_region
        _
      $region32: #{tpu_custom_call.1} parent=27 // pred_fallthru
        _
    $region28: #{tpu_custom_call.1} parent=5 // pred_fallthru
      _
    %p547 = scmp.le.s32.totalorder 2, %s8
    // Predicated region
    $region33: #{tpu_custom_call.1} parent=5 // pred_check
      %p548 = pneg %p547
    $region34: #{tpu_custom_call.1} parent=5 // pred_check_branch
      %550 = sbr.rel (%p548) target = $region36
    $region35: #{tpu_custom_call.1} parent=5 // pred_region
      %s551 = ssub.s32 %s8, 2
      // Predicated region
      $region37: #{tpu_custom_call.1} parent=35 // pred_check
        %p552 = pneg %p84
      $region38: #{tpu_custom_call.1} parent=35 // pred_check_branch
        %554 = sbr.rel (%p552) target = $region40
      $region39: #{tpu_custom_call.1} parent=35 // pred_region
        %p555 = scmp.lt.s32.totalorder %s14, 1
        %s556 = scalar_select %p555, %s14, 1
        %s557 = smul.addr %s556, 32
        %s558 = smul.addr %s557, 8
        %s559 = scalar_lea.vmem %s2, %s558
      $region40: #{tpu_custom_call.1} parent=35 // pred_fallthru
        _
    $region36: #{tpu_custom_call.1} parent=5 // pred_fallthru
      _
  $region6: #{tpu_custom_call.1} parent=0 // loop_footer
    %s12 = sadd.s32 1, %s8
  $region7: #{tpu_custom_call.1} parent=0 // loop_footer_branch
    %7 = sbr.rel target = $region3
  $region8: #{tpu_custom_call.1} parent=0 // loop_exit
    _

</llo_original>
